<compile_context>
chip_gen: v6e
topology: v6e:2x2x1
jax: 0.10.0
libtpu: 0.0.40
codegen_flags: <defaults>
</compile_context>

<pallas_src>
import math
from functools import lru_cache

import numpy as np
import jax
import jax.numpy as jnp
from jax import lax
from jax.experimental import pallas as pl
from jax.experimental.pallas import tpu as pltpu

# ---- kaldi spectrogram constants (torchaudio defaults) ----------------------
SAMPLE_RATE = 16000
FRAME_LENGTH_MS = 25.0
FRAME_SHIFT_MS = 10.0
PREEMPH = 0.97
EPS = 1.1920928955078125e-07          # torch.finfo(torch.float32).eps
LOG_ENERGY_FLOOR = 0.0                # energy_floor=1.0 -> log(1.0)

WINDOW_SIZE = int(SAMPLE_RATE * FRAME_LENGTH_MS * 0.001)    # 400
WINDOW_SHIFT = int(SAMPLE_RATE * FRAME_SHIFT_MS * 0.001)    # 160
PADDED_SIZE = 1 << (WINDOW_SIZE - 1).bit_length()           # 512 (pow2 FFT)
NUM_BINS = PADDED_SIZE // 2 + 1                             # 257
HALF = PADDED_SIZE // 2                                     # 256 (bins 1..256)
OUT_WIDTH = 384                                             # 257 padded to 3*128


# ---- Pallas kernel -----------------------------------------------------------
def _spectrogram_kernel(frames_ref, dft_ref, out_ref):
    # frames_ref : (tm, 512) f32 zero-padded frames (lanes >= 400 are zero)
    # dft_ref    : (512, 512) bf16 fused preemph*window*[cos|sin] matrix
    # out_ref    : (tm, 384) f32 lane-dense output slab
    x = frames_ref[...]
    tm = x.shape[0]
    col = lax.broadcasted_iota(jnp.int32, (tm, PADDED_SIZE), 1)
    valid = col < WINDOW_SIZE

    # remove DC offset (mean over the true 400 samples; padded tail stays 0)
    mean = jnp.sum(x, axis=-1, keepdims=True) * (1.0 / float(WINDOW_SIZE))
    x = jnp.where(valid, x - mean, 0.0)

    # raw log-energy (after DC removal, before preemphasis / windowing)
    energy = jnp.sum(x * x, axis=-1, keepdims=True)
    log_energy = jnp.maximum(jnp.log(jnp.maximum(energy, EPS)),
                             LOG_ENERGY_FLOOR)

    # preemphasis + povey window + real DFT (bins 1..256), all folded into a
    # single bf16 MXU matmul: columns [0:256) = cos terms, [256:512) = sin.
    dft = jnp.dot(x.astype(jnp.bfloat16), dft_ref[...],
                  preferred_element_type=jnp.float32)        # (tm, 512) f32
    re = dft[:, :HALF]
    im = dft[:, HALF:]
    logspec = jnp.log(jnp.maximum(re * re + im * im, EPS))   # (tm, 256) only

    # assemble lane-dense (tm, 384) output: lane 0 = log-energy (kaldi
    # convention), lanes 1..256 = spectral bins, lanes 257..383 = padding.
    padded = jnp.concatenate(
        [logspec, jnp.zeros((tm, OUT_WIDTH - HALF), jnp.float32)], axis=1)
    shifted = pltpu.roll(padded, shift=1, axis=1)            # bins -> lanes 1..256
    lane = lax.broadcasted_iota(jnp.int32, (tm, OUT_WIDTH), 1)
    out_ref[...] = jnp.where(lane == 0, log_energy, shifted)


# ---- host-side constant: fused (preemph * window * real-DFT) matrix ----------
@lru_cache(maxsize=None)
def _fused_dft_matrix_bf16():
    n = np.arange(WINDOW_SIZE, dtype=np.float64)
    povey = (0.5 - 0.5 * np.cos(2.0 * np.pi * n / (WINDOW_SIZE - 1))) ** 0.85
    w = np.zeros((PADDED_SIZE,), np.float64)
    w[:WINDOW_SIZE] = povey

    t = np.arange(PADDED_SIZE, dtype=np.float64)[:, None]
    k = np.arange(1, HALF + 1, dtype=np.float64)[None, :]     # bins 1..256
    ang = (2.0 * np.pi / PADDED_SIZE) * t * k
    wc = w[:, None] * np.concatenate([np.cos(ang), np.sin(ang)], axis=1)

    # fold preemphasis y[n] = x[n] - 0.97*x[n-1] (replicate first sample):
    #   coeff of x[m]:  wc[m] - 0.97*wc[m+1]          (m >= 1)
    #                   (1-0.97)*wc[0] - 0.97*wc[1]   (m == 0)
    m = wc.copy()
    m[:-1, :] -= PREEMPH * wc[1:, :]
    m[0, :] -= PREEMPH * wc[0, :]
    return jnp.asarray(m, dtype=jnp.bfloat16)


def _round_up(x, m):
    return ((x + m - 1) // m) * m


# ---- wrapper -----------------------------------------------------------------
def extract_audio_feature(waveform, *, tm=256):
    """Equivalent of ExtractAudioFeature(mode='spectrogram').forward.

    tm: frame-tile size (frames per grid step). 256 suits v6e/v7x MXUs;
    use 128 on v5e."""
    wav = jnp.reshape(waveform, (-1,)).astype(jnp.float32)    # .view(1, -1)
    T = wav.shape[0]
    num_frames = 1 + (T - WINDOW_SIZE) // WINDOW_SHIFT        # snip_edges=True

    # gather-free framing: non-overlapping 160-sample chunks; frame m =
    # chunks[m] ++ chunks[m+1] ++ chunks[m+2][:80], zero-padded to 512 lanes.
    n_chunks = num_frames + 2
    total = n_chunks * WINDOW_SHIFT
    wav = jnp.pad(wav, (0, total - T)) if total >= T else wav[:total]
    chunks = wav.reshape(n_chunks, WINDOW_SHIFT)
    tail = WINDOW_SIZE - 2 * WINDOW_SHIFT                     # 80
    frames = jnp.concatenate(
        [chunks[0:num_frames],
         chunks[1:num_frames + 1],
         chunks[2:num_frames + 2, :tail],
         jnp.zeros((num_frames, PADDED_SIZE - WINDOW_SIZE), jnp.float32)],
        axis=1)                                               # (M, 512)

    # tile size: multiple of 8 sublanes, capped to the padded frame count, and
    # kept small enough that the grid has >= 2 steps (v7x has 2 TensorCores).
    tm = max(8, _round_up(tm, 8))
    m8 = _round_up(num_frames, 8)
    tm_eff = max(8, min(tm, m8))
    if m8 >= 16 and m8 <= tm_eff:
        tm_eff = _round_up((m8 + 1) // 2, 8)
    m_padded = _round_up(num_frames, tm_eff)
    if m_padded > num_frames:
        frames = jnp.pad(frames, ((0, m_padded - num_frames), (0, 0)))

    dft_mat = _fused_dft_matrix_bf16()

    out = pl.pallas_call(
        _spectrogram_kernel,
        out_shape=jax.ShapeDtypeStruct((m_padded, OUT_WIDTH), jnp.float32),
        grid=(m_padded // tm_eff,),
        in_specs=[
            pl.BlockSpec((tm_eff, PADDED_SIZE), lambda i: (i, 0)),
            # constant block index -> fetched once, stays resident in VMEM
            pl.BlockSpec((PADDED_SIZE, PADDED_SIZE), lambda i: (0, 0)),
        ],
        out_specs=pl.BlockSpec((tm_eff, OUT_WIDTH), lambda i: (i, 0)),
        compiler_params=pltpu.CompilerParams(
            dimension_semantics=("parallel",)),
    )(frames, dft_mat)

    return out[:num_frames, :NUM_BINS]


# ---- pure-JAX reference (for correctness check only) -------------------------
def _reference(waveform):
    wav = jnp.reshape(waveform, (-1,)).astype(jnp.float32)
    T = wav.shape[0]
    M = 1 + (T - WINDOW_SIZE) // WINDOW_SHIFT
    idx = jnp.arange(M)[:, None] * WINDOW_SHIFT + jnp.arange(WINDOW_SIZE)[None, :]
    x = wav[idx]
    x = x - jnp.mean(x, axis=-1, keepdims=True)
    log_e = jnp.maximum(jnp.log(jnp.maximum(jnp.sum(x * x, axis=-1), EPS)),
                        LOG_ENERGY_FLOOR)
    prev = jnp.concatenate([x[:, :1], x[:, :-1]], axis=-1)
    x = x - PREEMPH * prev
    n = jnp.arange(WINDOW_SIZE, dtype=jnp.float32)
    povey = (0.5 - 0.5 * jnp.cos(2.0 * math.pi * n / (WINDOW_SIZE - 1))) ** 0.85
    x = x * povey
    x = jnp.pad(x, ((0, 0), (0, PADDED_SIZE - WINDOW_SIZE)))
    power = jnp.abs(jnp.fft.rfft(x, axis=-1)) ** 2
    spec = jnp.log(jnp.maximum(power, EPS))
    return spec.at[:, 0].set(log_e)


if __name__ == "__main__":
    key = jax.random.PRNGKey(0)
    # T chosen so num_frames = 16 (small but representative)
    T = WINDOW_SIZE + WINDOW_SHIFT * 15          # 2800 samples
    waveform = jax.random.normal(key, (1, T), dtype=jnp.float32)

    feats = jax.block_until_ready(jax.jit(extract_audio_feature)(waveform))
    assert feats.shape == (16, NUM_BINS), feats.shape

    ref = _reference(waveform)

    # bin 0 (raw log-energy) is a pure f32 path -> tight check
    assert jnp.allclose(feats[:, 0], ref[:, 0], rtol=1e-4, atol=1e-3), (
        float(jnp.max(jnp.abs(feats[:, 0] - ref[:, 0]))))

    # spectral bins go through a bf16 MXU matmul; compare in the linear power
    # domain with a mixed relative / spectrum-scale absolute tolerance
    # (taking the log of near-zero bins would amplify benign bf16 noise).
    pk, pr = jnp.exp(feats[:, 1:]), jnp.exp(ref[:, 1:])
    tol = 3e-2 * pr + 1e-3 * jnp.mean(pr)
    assert bool(jnp.all(jnp.abs(pk - pr) <= tol)), (
        float(jnp.max(jnp.abs(pk - pr) - tol)))

    # and the bulk of log-power bins should still agree closely
    assert float(jnp.mean(jnp.abs(feats[:, 1:] - ref[:, 1:]))) < 3e-2

    print("KERNEL_OK")
</pallas_src>

<mosaic_0001>
module attributes {stable_mosaic.version = 11 : i64} {
  func.func @_spectrogram_kernel(%arg0: i32, %arg1: memref<8x512xf32, #tpu.memory_space<vmem>>, %arg2: memref<512x512xbf16, #tpu.memory_space<vmem>>, %arg3: memref<8x384xf32, #tpu.memory_space<vmem>>) attributes {dimension_semantics = [#tpu.dimension_semantics<parallel>], iteration_bounds = array<i64: 2>, scalar_prefetch = 0 : i64, scratch_operands = 0 : i64, tpu.core_type = #tpu.core_type<tc>, window_params = [{transform_indices = @transform_0, window_bounds = array<i64: 8, 512>}, {pipeline_mode = #tpu.pipeline_mode<synchronous>, transform_indices = @transform_1, window_bounds = array<i64: 512, 512>}, {transform_indices = @transform_2, window_bounds = array<i64: 8, 384>}]} {
    %c0 = arith.constant 0 : index
    %c0_0 = arith.constant 0 : index
    %0 = vector.load %arg1[%c0, %c0_0] : memref<8x512xf32, #tpu.memory_space<vmem>>, vector<8x512xf32>
    %1 = tpu.iota {dimensions = array<i32: 1>} : vector<8x512xi32>
    %c400_i32 = arith.constant 400 : i32
    %2 = vector.broadcast %c400_i32 : i32 to vector<8x512xi32>
    %3 = arith.cmpi slt, %1, %2 : vector<8x512xi32>
    %cst = arith.constant dense<0.000000e+00> : vector<8xf32>
    %4 = vector.multi_reduction <add>, %0, %cst [1] : vector<8x512xf32> to vector<8xf32>
    %5 = vector.shape_cast %4 : vector<8xf32> to vector<8x1xf32>
    %cst_1 = arith.constant 2.500000e-03 : f32
    %6 = vector.broadcast %cst_1 : f32 to vector<8x1xf32>
    %7 = arith.mulf %5, %6 : vector<8x1xf32>
    %8 = vector.broadcast %7 : vector<8x1xf32> to vector<8x512xf32>
    %9 = arith.subf %0, %8 : vector<8x512xf32>
    %cst_2 = arith.constant 0.000000e+00 : f32
    %10 = vector.broadcast %cst_2 : f32 to vector<8x512xf32>
    %11 = arith.select %3, %9, %10 : vector<8x512xi1>, vector<8x512xf32>
    %12 = arith.mulf %11, %11 : vector<8x512xf32>
    %cst_3 = arith.constant dense<0.000000e+00> : vector<8xf32>
    %13 = vector.multi_reduction <add>, %12, %cst_3 [1] : vector<8x512xf32> to vector<8xf32>
    %14 = vector.shape_cast %13 : vector<8xf32> to vector<8x1xf32>
    %cst_4 = arith.constant 1.1920929E-7 : f32
    %15 = vector.broadcast %cst_4 : f32 to vector<8x1xf32>
    %16 = arith.maximumf %14, %15 : vector<8x1xf32>
    %17 = math.log %16 : vector<8x1xf32>
    %cst_5 = arith.constant 0.000000e+00 : f32
    %18 = vector.broadcast %cst_5 : f32 to vector<8x1xf32>
    %19 = arith.maximumf %17, %18 : vector<8x1xf32>
    %20 = arith.truncf %11 : vector<8x512xf32> to vector<8x512xbf16>
    %c0_6 = arith.constant 0 : index
    %c0_7 = arith.constant 0 : index
    %21 = vector.load %arg2[%c0_6, %c0_7] : memref<512x512xbf16, #tpu.memory_space<vmem>>, vector<512x512xbf16>
    %cst_8 = arith.constant dense<0.000000e+00> : vector<8x512xf32>
    %22 = tpu.matmul %20, %21, %cst_8 {dimension_numbers = #tpu.dot_dimension_numbers<[1], [0], [0], [1], [0, 0, 1, 1], [], []>} : vector<8x512xbf16>, vector<512x512xbf16>, vector<8x512xf32> -> vector<8x512xf32>
    %23 = vector.extract_strided_slice %22 {offsets = [0, 0], sizes = [8, 256], strides = [1, 1]} : vector<8x512xf32> to vector<8x256xf32>
    %24 = vector.extract_strided_slice %22 {offsets = [0, 256], sizes = [8, 256], strides = [1, 1]} : vector<8x512xf32> to vector<8x256xf32>
    %25 = arith.mulf %23, %23 : vector<8x256xf32>
    %26 = arith.mulf %24, %24 : vector<8x256xf32>
    %27 = arith.addf %25, %26 : vector<8x256xf32>
    %cst_9 = arith.constant 1.1920929E-7 : f32
    %28 = vector.broadcast %cst_9 : f32 to vector<8x256xf32>
    %29 = arith.maximumf %27, %28 : vector<8x256xf32>
    %30 = math.log %29 : vector<8x256xf32>
    %cst_10 = arith.constant 0.000000e+00 : f32
    %31 = vector.broadcast %cst_10 : f32 to vector<8x128xf32>
    %32 = tpu.concatenate %30, %31 in 1 : vector<8x256xf32>, vector<8x128xf32> -> vector<8x384xf32>
    %c1_i32 = arith.constant 1 : i32
    %33 = tpu.dynamic_rotate %32 by %c1_i32 dim 1 : vector<8x384xf32>, i32 -> vector<8x384xf32>
    %34 = tpu.iota {dimensions = array<i32: 1>} : vector<8x384xi32>
    %c0_i32 = arith.constant 0 : i32
    %35 = vector.broadcast %c0_i32 : i32 to vector<8x384xi32>
    %36 = arith.cmpi eq, %34, %35 : vector<8x384xi32>
    %37 = vector.shape_cast %19 : vector<8x1xf32> to vector<8x1xf32>
    %38 = vector.broadcast %37 : vector<8x1xf32> to vector<8x384xf32>
    %39 = arith.select %36, %38, %33 : vector<8x384xi1>, vector<8x384xf32>
    %c0_11 = arith.constant 0 : index
    %c0_12 = arith.constant 0 : index
    %40 = vector.load %arg3[%c0_11, %c0_12] : memref<8x384xf32, #tpu.memory_space<vmem>>, vector<8x384xf32>
    tpu.vector_store %arg3[%c0_11, %c0_12], %39 {strides = array<i32>} : memref<8x384xf32, #tpu.memory_space<vmem>>, vector<8x384xf32>,
    return
  }
  func.func @transform_0(%arg0: i32) -> (i32, i32) {
    %c0_i32 = arith.constant 0 : i32
    %c0_i32_0 = arith.constant 0 : i32
    return %arg0, %c0_i32 : i32, i32
  }
  func.func @transform_1(%arg0: i32) -> (i32, i32) {
    %c0_i32 = arith.constant 0 : i32
    %c0_i32_0 = arith.constant 0 : i32
    %c0_i32_1 = arith.constant 0 : i32
    return %c0_i32, %c0_i32_0 : i32, i32
  }
  func.func @transform_2(%arg0: i32) -> (i32, i32) {
    %c0_i32 = arith.constant 0 : i32
    %c0_i32_0 = arith.constant 0 : i32
    return %arg0, %c0_i32 : i32, i32
  }
}

</mosaic_0001>

<llo_original>
// kernel: extract_audio_feature.1
$region0: #{extract_audio_feature.1}
  #allocation0 [shape = 'u32[]', space=smem, size = 0x4, offset = 0x4, fixed_abs, tag = 'smem constant byte address 0x4 - core index']
  #allocation1 [shape = 'u32[144,128]{1,0:T(1,128)}', space=vmem, size = 0x12000, scoped, tag = 'internal scratch']
  %s0 = inlined_call_operand.vmem [shape: f32[16,512], index: 0, kind: input, shape index: {}]
  %s1 = inlined_call_operand.hbm [shape: bf16[512,512], index: 1, kind: input, shape index: {}]
  %s2 = inlined_call_operand.hbm [shape: f32[16,384], index: 2, kind: output, shape index: {}]
  %s3 = sld [smem:[#allocation0]]
  $region45: #{extract_audio_feature.1} parent=0
    _
  %s5 = ssub.s32 1, %s3
  %s6 = scalar_select 0, %s5, %s3
  $region1: #{extract_audio_feature.1} parent=0
    #allocation2 [shape = 'u8[524288]{0}', space=vmem, size = 0x80000, scoped, tag = 'input window, operand 1, single buffered']
    #allocation3 [shape = 's32[2]{0}', space=sflag, size = 0x8, scoped, tag = 'scoped memory for extract_audio_feature.1']
    #allocation4 [shape = 's32[2]{0}', space=sflag, size = 0x8, scoped, tag = 'scoped memory for extract_audio_feature.1']
    #allocation5 [shape = 'u8[24576]{0}', space=vmem, size = 0x6000, scoped, tag = 'output window, operand 0']
    %7 = vsyncpa [#allocation3], 0
    %8 = vsyncpa [#allocation4], 0
    %s9 = scalar_lea.sflag [#allocation4], 1
    %10 = vsyncpa %s9, 0
    loop: start=0, step=1, limit=4
    $region2: #{extract_audio_feature.1} parent=1 // loop_pre_header
      _
    $region3: #{extract_audio_feature.1} parent=1 // loop_header
      %s12 = sphi 0, %s16
      %p13 = scmp.ge.s32.totalorder %s12, 4
      %s22 = sphi 0, %s24
      %s25 = sphi 0, %s22
      %s26 = sphi 0, %s25
      %s42 = sphi 0, %s26
      %s46 = sphi 0, %s46
      %s48 = sphi 0, %s46
      %s49 = sphi 0, %s48
      %s63 = sphi 0, %s49
      %s69 = sphi 0, %s71
      %s72 = sphi 0, %s69
      %s73 = sphi 0, %s72
      %s89 = sphi 0, %s73
    $region4: #{extract_audio_feature.1} parent=1 // loop_header_branch
      %15 = sbr.rel (%p13) target = $region8
    $region5: #{extract_audio_feature.1} parent=1 // loop_body
      %s17 = ssub.s32 %s12, 1
      %s18 = ssub.s32 %s12, 2
      %s19 = sadd.s32 %s12, 1
      %s20 = ssub.s32 %s12, %s19
      %p21 = scmp.eq.s32.totalorder %s20, 0
      %s23 = sadd.s32 %s22, 1
      %s24 = scalar_select %p21, %s22, %s23
      %p27 = pneg %p21
      %p28 = scmp.eq.s32.totalorder %s12, 1
      %p29 = por %p27, %p28
      %p30 = scmp.ne.s32.totalorder %s22, %s25
      %p31 = scmp.eq.s32.totalorder %s12, 0
      %p32 = por %p30, %p31
      %p33 = scmp.ne.s32.totalorder %s22, %s25
      %p34 = scmp.eq.s32.totalorder %s17, 1
      %p35 = por %p33, %p34
      %p36 = scmp.ne.s32.totalorder %s25, %s26
      %p37 = scmp.eq.s32.totalorder %s17, 0
      %p38 = por %p36, %p37
      %p39 = scmp.ne.s32.totalorder %s25, %s26
      %p40 = scmp.eq.s32.totalorder %s18, 1
      %p41 = por %p39, %p40
      %p43 = scmp.ne.s32.totalorder %s26, %s42
      %p44 = scmp.eq.s32.totalorder %s18, 0
      %p45 = por %p43, %p44
      %s47 = sadd.s32 %s46, 1
      %p50 = scmp.eq.s32.totalorder %s12, 1
      %p51 = scmp.ne.s32.totalorder %s46, %s48
      %p52 = scmp.eq.s32.totalorder %s12, 0
      %p53 = por %p51, %p52
      %p54 = scmp.ne.s32.totalorder %s46, %s48
      %p55 = scmp.eq.s32.totalorder %s17, 1
      %p56 = por %p54, %p55
      %p57 = scmp.ne.s32.totalorder %s48, %s49
      %p58 = scmp.eq.s32.totalorder %s17, 0
      %p59 = por %p57, %p58
      %p60 = scmp.ne.s32.totalorder %s48, %s49
      %p61 = scmp.eq.s32.totalorder %s18, 1
      %p62 = por %p60, %p61
      %p64 = scmp.ne.s32.totalorder %s49, %s63
      %p65 = scmp.eq.s32.totalorder %s18, 0
      %p66 = por %p64, %p65
      %s67 = ssub.s32 %s12, %s19
      %p68 = scmp.eq.s32.totalorder %s67, 0
      %s70 = sadd.s32 %s69, 1
      %s71 = scalar_select %p68, %s69, %s70
      %p74 = pneg %p68
      %p75 = scmp.eq.s32.totalorder %s12, 1
      %p76 = por %p74, %p75
      %p77 = scmp.ne.s32.totalorder %s69, %s72
      %p78 = scmp.eq.s32.totalorder %s12, 0
      %p79 = por %p77, %p78
      %p80 = scmp.ne.s32.totalorder %s69, %s72
      %p81 = scmp.eq.s32.totalorder %s17, 1
      %p82 = por %p80, %p81
      %p83 = scmp.ne.s32.totalorder %s72, %s73
      %p84 = scmp.eq.s32.totalorder %s17, 0
      %p85 = por %p83, %p84
      %p86 = scmp.ne.s32.totalorder %s72, %s73
      %p87 = scmp.eq.s32.totalorder %s18, 1
      %p88 = por %p86, %p87
      %p90 = scmp.ne.s32.totalorder %s73, %s89
      %p91 = scmp.eq.s32.totalorder %s18, 0
      %p92 = por %p90, %p91
      %p93 = scmp.le.s32.totalorder 1, %s12
      %p94 = scmp.lt.s32.totalorder %s12, 3
      %p95 = pnand %p93, %p94
      %p96 = pneg %p95
      // Predicated region
      $region9: #{extract_audio_feature.1} parent=5 // pred_check
        _
      $region10: #{extract_audio_feature.1} parent=5 // pred_check_branch
        %98 = sbr.rel (%p95) target = $region12
      $region11: #{extract_audio_feature.1} parent=5 // pred_region
        %s99 = ssub.s32 %s12, 1
        // Predicated region
        $region13: #{extract_audio_feature.1} parent=11 // pred_check
          %p100 = pneg %p59
        $region14: #{extract_audio_feature.1} parent=11 // pred_check_branch
          %102 = sbr.rel (%p100) target = $region16
        $region15: #{extract_audio_feature.1} parent=11 // pred_region
          %s104 = ssub.s32 16384, 16384
          %105 = vsyncadd [#allocation3], %s104
          %s106 = sshll.u32 [#allocation2], 4
          %s107 = int_to_ptr.vmem [resolvable:$true] %s106
          %112 = dma.hbm_to_vmem [thread:$0]  %s1, 16384, %s107, [#allocation3], 256, 256, 16
        $region16: #{extract_audio_feature.1} parent=11 // pred_fallthru
          _
      $region12: #{extract_audio_feature.1} parent=5 // pred_fallthru
        _
      %p113 = scmp.lt.s32.totalorder %s12, 2
      // Predicated region
      $region17: #{extract_audio_feature.1} parent=5 // pred_check
        %p114 = pneg %p113
      $region18: #{extract_audio_feature.1} parent=5 // pred_check_branch
        %116 = sbr.rel (%p114) target = $region20
      $region19: #{extract_audio_feature.1} parent=5 // pred_region
        // Predicated region
        $region21: #{extract_audio_feature.1} parent=19 // pred_check
          %p117 = pneg %p32
        $region22: #{extract_audio_feature.1} parent=19 // pred_check_branch
          %119 = sbr.rel (%p117) target = $region24
        $region23: #{extract_audio_feature.1} parent=19 // pred_region
          %p120 = scmp.lt.s32.totalorder %s12, 1
          %s121 = scalar_select %p120, %s12, 1
          %s122 = smul.addr %s121, 4
          %s123 = smul.addr %s122, 8
          %s124 = scalar_lea.vmem %s0, %s123
        $region24: #{extract_audio_feature.1} parent=19 // pred_fallthru
          _
      $region20: #{extract_audio_feature.1} parent=5 // pred_fallthru
        _
      %p125 = scmp.le.s32.totalorder 1, %s12
      %p126 = scmp.lt.s32.totalorder %s12, 3
      %p127 = pnand %p125, %p126
      %p128 = pneg %p127
      // Predicated region
      $region25: #{extract_audio_feature.1} parent=5 // pred_check
        _
      $region26: #{extract_audio_feature.1} parent=5 // pred_check_branch
        %130 = sbr.rel (%p127) target = $region28
      $region27: #{extract_audio_feature.1} parent=5 // pred_region
        %s131 = ssub.s32 %s12, 1
        // Predicated region
        $region29: #{extract_audio_feature.1} parent=27 // pred_check
          %p132 = pneg %p59
        $region30: #{extract_audio_feature.1} parent=27 // pred_check_branch
          %134 = sbr.rel (%p132) target = $region32
        $region31: #{extract_audio_feature.1} parent=27 // pred_region
          %135 = dma.done [#allocation3], 16384
        $region32: #{extract_audio_feature.1} parent=27 // pred_fallthru
          _
        %p136 = scmp.lt.s32.totalorder %s17, 1
        %s137 = scalar_select %p136, %s17, 1
        %s138 = smul.addr %s137, 4
        %s139 = smul.addr %s138, 8
        %s140 = scalar_lea.vmem %s0, %s139
        %p141 = pneg %p38
        %p142 = pneg %p35
        %p143 = pneg %p59
        %p144 = pneg %p56
        %p145 = pneg %p85
        %p146 = pneg %p82
        %s147 = sand.u32 %s72, 1
        %s148 = scalar_lea.sflag [#allocation4], %s147
        %s149 = sand.u32 %s72, 1
        %s150 = smul.addr %s149, 24
        %s151 = scalar_lea.vmem [#allocation5], %s150
        %p152 = scmp.lt.s32.totalorder %s17, 1
        %s153 = scalar_select %p152, %s17, 1
        %s154 = smul.addr %s153, 4
        %s155 = smul.addr %s154, 8
        %s156 = scalar_lea.vmem %s0, %s155
        %v157 = vld [vmem:[%s156] sm:$0xff]
        %v158 = vld [vmem:[%s156 + $0x8] sm:$0xff]
        %v159 = vld [vmem:[%s156 + $0x10] sm:$0xff]
        %v160 = vld [vmem:[%s156 + $0x18] sm:$0xff]
        %v161 = vlaneseq
        %v162 = vand.u32 %v161, 127
        %v163 = vadd.s32 %v162, 128
        %v164 = vadd.s32 %v162, 256
        %v165 = vadd.s32 %v162, 384
        %vm166 = vcmp.lt.s32.totalorder %v162, 400
        %vm167 = vcmp.lt.s32.totalorder %v163, 400
        %vm168 = vcmp.lt.s32.totalorder %v164, 400
        %vm169 = vcmp.lt.s32.totalorder %v165, 400
        %v170 = vadd.f32 %v157, %v158
        %v171 = vadd.f32 %v170, %v159
        %v172 = vadd.f32 %v171, %v160
        %173 = vadd.xlane.f32.xlu0 %v172
        %v174 = vpop.xlane.xlu0 %173
        %v175 = vmul.f32 %v174, 0.0025
        %v176 = vsub.f32 %v157, %v175
        %v177 = vsub.f32 %v158, %v175
        %v178 = vsub.f32 %v159, %v175
        %v179 = vsub.f32 %v160, %v175
        %v180 = vsel %vm166, %v176, 0.0
        %v181 = vsel %vm167, %v177, 0.0
        %v182 = vsel %vm168, %v178, 0.0
        %v183 = vsel %vm169, %v179, 0.0
        %v184 = vmul.f32 %v180, %v180
        %v185 = vmul.f32 %v181, %v181
        %v186 = vmul.f32 %v182, %v182
        %v187 = vmul.f32 %v183, %v183
        %v188 = vadd.f32 %v184, %v185
        %v189 = vadd.f32 %v188, %v186
        %v190 = vadd.f32 %v189, %v187
        %191 = vadd.xlane.f32.xlu0 %v190
        %v192 = vpop.xlane.xlu0 %191
        %v193 = vmax.f32 %v192, 1.1920929e-07
        %v194 = vlog2.pop %v193
        %v195 = vmul.f32 %v194, 0.6931472
        %v196 = vmax.f32 %v195, 0.0
        %v197 = vpack.c.bf16 %v180, %v180
        %v198 = vpack.c.bf16 %v181, %v181
        %v199 = vpack.c.bf16 %v182, %v182
        %v200 = vpack.c.bf16 %v183, %v183
        %v201 = vld [vmem:[#allocation2] sm:$0xff]
        %v202 = vld [vmem:[#allocation2 + $0x8] sm:$0xff]
        %v203 = vld [vmem:[#allocation2 + $0x10] sm:$0xff]
        %v204 = vld [vmem:[#allocation2 + $0x18] sm:$0xff]
        %v205 = vld [vmem:[#allocation2 + $0x20] sm:$0xff]
        %v206 = vld [vmem:[#allocation2 + $0x28] sm:$0xff]
        %v207 = vld [vmem:[#allocation2 + $0x30] sm:$0xff]
        %v208 = vld [vmem:[#allocation2 + $0x38] sm:$0xff]
        %v209 = vld [vmem:[#allocation2 + $0x40] sm:$0xff]
        %v210 = vld [vmem:[#allocation2 + $0x48] sm:$0xff]
        %v211 = vld [vmem:[#allocation2 + $0x50] sm:$0xff]
        %v212 = vld [vmem:[#allocation2 + $0x58] sm:$0xff]
        %v213 = vld [vmem:[#allocation2 + $0x60] sm:$0xff]
        %v214 = vld [vmem:[#allocation2 + $0x68] sm:$0xff]
        %v215 = vld [vmem:[#allocation2 + $0x70] sm:$0xff]
        %v216 = vld [vmem:[#allocation2 + $0x78] sm:$0xff]
        %v217 = vld [vmem:[#allocation2 + $0x80] sm:$0xff]
        %v218 = vld [vmem:[#allocation2 + $0x88] sm:$0xff]
        %v219 = vld [vmem:[#allocation2 + $0x90] sm:$0xff]
        %v220 = vld [vmem:[#allocation2 + $0x98] sm:$0xff]
        %v221 = vld [vmem:[#allocation2 + $0xa0] sm:$0xff]
        %v222 = vld [vmem:[#allocation2 + $0xa8] sm:$0xff]
        %v223 = vld [vmem:[#allocation2 + $0xb0] sm:$0xff]
        %v224 = vld [vmem:[#allocation2 + $0xb8] sm:$0xff]
        %v225 = vld [vmem:[#allocation2 + $0xc0] sm:$0xff]
        %v226 = vld [vmem:[#allocation2 + $0xc8] sm:$0xff]
        %v227 = vld [vmem:[#allocation2 + $0xd0] sm:$0xff]
        %v228 = vld [vmem:[#allocation2 + $0xd8] sm:$0xff]
        %v229 = vld [vmem:[#allocation2 + $0xe0] sm:$0xff]
        %v230 = vld [vmem:[#allocation2 + $0xe8] sm:$0xff]
        %v231 = vld [vmem:[#allocation2 + $0xf0] sm:$0xff]
        %v232 = vld [vmem:[#allocation2 + $0xf8] sm:$0xff]
        %v233 = vld [vmem:[#allocation2 + $0x100] sm:$0xff]
        %v234 = vld [vmem:[#allocation2 + $0x108] sm:$0xff]
        %v235 = vld [vmem:[#allocation2 + $0x110] sm:$0xff]
        %v236 = vld [vmem:[#allocation2 + $0x118] sm:$0xff]
        %v237 = vld [vmem:[#allocation2 + $0x120] sm:$0xff]
        %v238 = vld [vmem:[#allocation2 + $0x128] sm:$0xff]
        %v239 = vld [vmem:[#allocation2 + $0x130] sm:$0xff]
        %v240 = vld [vmem:[#allocation2 + $0x138] sm:$0xff]
        %v241 = vld [vmem:[#allocation2 + $0x140] sm:$0xff]
        %v242 = vld [vmem:[#allocation2 + $0x148] sm:$0xff]
        %v243 = vld [vmem:[#allocation2 + $0x150] sm:$0xff]
        %v244 = vld [vmem:[#allocation2 + $0x158] sm:$0xff]
        %v245 = vld [vmem:[#allocation2 + $0x160] sm:$0xff]
        %v246 = vld [vmem:[#allocation2 + $0x168] sm:$0xff]
        %v247 = vld [vmem:[#allocation2 + $0x170] sm:$0xff]
        %v248 = vld [vmem:[#allocation2 + $0x178] sm:$0xff]
        %v249 = vld [vmem:[#allocation2 + $0x180] sm:$0xff]
        %v250 = vld [vmem:[#allocation2 + $0x188] sm:$0xff]
        %v251 = vld [vmem:[#allocation2 + $0x190] sm:$0xff]
        %v252 = vld [vmem:[#allocation2 + $0x198] sm:$0xff]
        %v253 = vld [vmem:[#allocation2 + $0x1a0] sm:$0xff]
        %v254 = vld [vmem:[#allocation2 + $0x1a8] sm:$0xff]
        %v255 = vld [vmem:[#allocation2 + $0x1b0] sm:$0xff]
        %v256 = vld [vmem:[#allocation2 + $0x1b8] sm:$0xff]
        %v257 = vld [vmem:[#allocation2 + $0x1c0] sm:$0xff]
        %v258 = vld [vmem:[#allocation2 + $0x1c8] sm:$0xff]
        %v259 = vld [vmem:[#allocation2 + $0x1d0] sm:$0xff]
        %v260 = vld [vmem:[#allocation2 + $0x1d8] sm:$0xff]
        %v261 = vld [vmem:[#allocation2 + $0x1e0] sm:$0xff]
        %v262 = vld [vmem:[#allocation2 + $0x1e8] sm:$0xff]
        %v263 = vld [vmem:[#allocation2 + $0x1f0] sm:$0xff]
        %v264 = vld [vmem:[#allocation2 + $0x1f8] sm:$0xff]
        %v265 = vld [vmem:[#allocation2 + $0x200] sm:$0xff]
        %v266 = vld [vmem:[#allocation2 + $0x208] sm:$0xff]
        %v267 = vld [vmem:[#allocation2 + $0x210] sm:$0xff]
        %v268 = vld [vmem:[#allocation2 + $0x218] sm:$0xff]
        %v269 = vld [vmem:[#allocation2 + $0x220] sm:$0xff]
        %v270 = vld [vmem:[#allocation2 + $0x228] sm:$0xff]
        %v271 = vld [vmem:[#allocation2 + $0x230] sm:$0xff]
        %v272 = vld [vmem:[#allocation2 + $0x238] sm:$0xff]
        %v273 = vld [vmem:[#allocation2 + $0x240] sm:$0xff]
        %v274 = vld [vmem:[#allocation2 + $0x248] sm:$0xff]
        %v275 = vld [vmem:[#allocation2 + $0x250] sm:$0xff]
        %v276 = vld [vmem:[#allocation2 + $0x258] sm:$0xff]
        %v277 = vld [vmem:[#allocation2 + $0x260] sm:$0xff]
        %v278 = vld [vmem:[#allocation2 + $0x268] sm:$0xff]
        %v279 = vld [vmem:[#allocation2 + $0x270] sm:$0xff]
        %v280 = vld [vmem:[#allocation2 + $0x278] sm:$0xff]
        %v281 = vld [vmem:[#allocation2 + $0x280] sm:$0xff]
        %v282 = vld [vmem:[#allocation2 + $0x288] sm:$0xff]
        %v283 = vld [vmem:[#allocation2 + $0x290] sm:$0xff]
        %v284 = vld [vmem:[#allocation2 + $0x298] sm:$0xff]
        %v285 = vld [vmem:[#allocation2 + $0x2a0] sm:$0xff]
        %v286 = vld [vmem:[#allocation2 + $0x2a8] sm:$0xff]
        %v287 = vld [vmem:[#allocation2 + $0x2b0] sm:$0xff]
        %v288 = vld [vmem:[#allocation2 + $0x2b8] sm:$0xff]
        %v289 = vld [vmem:[#allocation2 + $0x2c0] sm:$0xff]
        %v290 = vld [vmem:[#allocation2 + $0x2c8] sm:$0xff]
        %v291 = vld [vmem:[#allocation2 + $0x2d0] sm:$0xff]
        %v292 = vld [vmem:[#allocation2 + $0x2d8] sm:$0xff]
        %v293 = vld [vmem:[#allocation2 + $0x2e0] sm:$0xff]
        %v294 = vld [vmem:[#allocation2 + $0x2e8] sm:$0xff]
        %v295 = vld [vmem:[#allocation2 + $0x2f0] sm:$0xff]
        %v296 = vld [vmem:[#allocation2 + $0x2f8] sm:$0xff]
        %v297 = vld [vmem:[#allocation2 + $0x300] sm:$0xff]
        %v298 = vld [vmem:[#allocation2 + $0x308] sm:$0xff]
        %v299 = vld [vmem:[#allocation2 + $0x310] sm:$0xff]
        %v300 = vld [vmem:[#allocation2 + $0x318] sm:$0xff]
        %v301 = vld [vmem:[#allocation2 + $0x320] sm:$0xff]
        %v302 = vld [vmem:[#allocation2 + $0x328] sm:$0xff]
        %v303 = vld [vmem:[#allocation2 + $0x330] sm:$0xff]
        %v304 = vld [vmem:[#allocation2 + $0x338] sm:$0xff]
        %v305 = vld [vmem:[#allocation2 + $0x340] sm:$0xff]
        %v306 = vld [vmem:[#allocation2 + $0x348] sm:$0xff]
        %v307 = vld [vmem:[#allocation2 + $0x350] sm:$0xff]
        %v308 = vld [vmem:[#allocation2 + $0x358] sm:$0xff]
        %v309 = vld [vmem:[#allocation2 + $0x360] sm:$0xff]
        %v310 = vld [vmem:[#allocation2 + $0x368] sm:$0xff]
        %v311 = vld [vmem:[#allocation2 + $0x370] sm:$0xff]
        %v312 = vld [vmem:[#allocation2 + $0x378] sm:$0xff]
        %v313 = vld [vmem:[#allocation2 + $0x380] sm:$0xff]
        %v314 = vld [vmem:[#allocation2 + $0x388] sm:$0xff]
        %v315 = vld [vmem:[#allocation2 + $0x390] sm:$0xff]
        %v316 = vld [vmem:[#allocation2 + $0x398] sm:$0xff]
        %v317 = vld [vmem:[#allocation2 + $0x3a0] sm:$0xff]
        %v318 = vld [vmem:[#allocation2 + $0x3a8] sm:$0xff]
        %v319 = vld [vmem:[#allocation2 + $0x3b0] sm:$0xff]
        %v320 = vld [vmem:[#allocation2 + $0x3b8] sm:$0xff]
        %v321 = vld [vmem:[#allocation2 + $0x3c0] sm:$0xff]
        %v322 = vld [vmem:[#allocation2 + $0x3c8] sm:$0xff]
        %v323 = vld [vmem:[#allocation2 + $0x3d0] sm:$0xff]
        %v324 = vld [vmem:[#allocation2 + $0x3d8] sm:$0xff]
        %v325 = vld [vmem:[#allocation2 + $0x3e0] sm:$0xff]
        %v326 = vld [vmem:[#allocation2 + $0x3e8] sm:$0xff]
        %v327 = vld [vmem:[#allocation2 + $0x3f0] sm:$0xff]
        %v328 = vld [vmem:[#allocation2 + $0x3f8] sm:$0xff]
        %v457 = vunpack.c.l.b16 %v201
        %v458 = vunpack.c.h.b16 %v201
        %v459 = vunpack.c.l.b16 %v202
        %v460 = vunpack.c.h.b16 %v202
        %v461 = vunpack.c.l.b16 %v203
        %v462 = vunpack.c.h.b16 %v203
        %v463 = vunpack.c.l.b16 %v204
        %v464 = vunpack.c.h.b16 %v204
        %v465 = vunpack.c.l.b16 %v205
        %v466 = vunpack.c.h.b16 %v205
        %v467 = vunpack.c.l.b16 %v206
        %v468 = vunpack.c.h.b16 %v206
        %v469 = vunpack.c.l.b16 %v207
        %v470 = vunpack.c.h.b16 %v207
        %v471 = vunpack.c.l.b16 %v208
        %v472 = vunpack.c.h.b16 %v208
        %v473 = vunpack.c.l.b16 %v209
        %v474 = vunpack.c.h.b16 %v209
        %v475 = vunpack.c.l.b16 %v210
        %v476 = vunpack.c.h.b16 %v210
        %v477 = vunpack.c.l.b16 %v211
        %v478 = vunpack.c.h.b16 %v211
        %v479 = vunpack.c.l.b16 %v212
        %v480 = vunpack.c.h.b16 %v212
        %v481 = vunpack.c.l.b16 %v213
        %v482 = vunpack.c.h.b16 %v213
        %v483 = vunpack.c.l.b16 %v214
        %v484 = vunpack.c.h.b16 %v214
        %v485 = vunpack.c.l.b16 %v215
        %v486 = vunpack.c.h.b16 %v215
        %v487 = vunpack.c.l.b16 %v216
        %v488 = vunpack.c.h.b16 %v216
        %v489 = vunpack.c.l.b16 %v217
        %v490 = vunpack.c.h.b16 %v217
        %v491 = vunpack.c.l.b16 %v218
        %v492 = vunpack.c.h.b16 %v218
        %v493 = vunpack.c.l.b16 %v219
        %v494 = vunpack.c.h.b16 %v219
        %v495 = vunpack.c.l.b16 %v220
        %v496 = vunpack.c.h.b16 %v220
        %v497 = vunpack.c.l.b16 %v221
        %v498 = vunpack.c.h.b16 %v221
        %v499 = vunpack.c.l.b16 %v222
        %v500 = vunpack.c.h.b16 %v222
        %v501 = vunpack.c.l.b16 %v223
        %v502 = vunpack.c.h.b16 %v223
        %v503 = vunpack.c.l.b16 %v224
        %v504 = vunpack.c.h.b16 %v224
        %v505 = vunpack.c.l.b16 %v225
        %v506 = vunpack.c.h.b16 %v225
        %v507 = vunpack.c.l.b16 %v226
        %v508 = vunpack.c.h.b16 %v226
        %v509 = vunpack.c.l.b16 %v227
        %v510 = vunpack.c.h.b16 %v227
        %v511 = vunpack.c.l.b16 %v228
        %v512 = vunpack.c.h.b16 %v228
        %v513 = vunpack.c.l.b16 %v229
        %v514 = vunpack.c.h.b16 %v229
        %v515 = vunpack.c.l.b16 %v230
        %v516 = vunpack.c.h.b16 %v230
        %v517 = vunpack.c.l.b16 %v231
        %v518 = vunpack.c.h.b16 %v231
        %v519 = vunpack.c.l.b16 %v232
        %v520 = vunpack.c.h.b16 %v232
        %v521 = vunpack.c.l.b16 %v233
        %v522 = vunpack.c.h.b16 %v233
        %v523 = vunpack.c.l.b16 %v234
        %v524 = vunpack.c.h.b16 %v234
        %v525 = vunpack.c.l.b16 %v235
        %v526 = vunpack.c.h.b16 %v235
        %v527 = vunpack.c.l.b16 %v236
        %v528 = vunpack.c.h.b16 %v236
        %v529 = vunpack.c.l.b16 %v237
        %v530 = vunpack.c.h.b16 %v237
        %v531 = vunpack.c.l.b16 %v238
        %v532 = vunpack.c.h.b16 %v238
        %v533 = vunpack.c.l.b16 %v239
        %v534 = vunpack.c.h.b16 %v239
        %v535 = vunpack.c.l.b16 %v240
        %v536 = vunpack.c.h.b16 %v240
        %v537 = vunpack.c.l.b16 %v241
        %v538 = vunpack.c.h.b16 %v241
        %v539 = vunpack.c.l.b16 %v242
        %v540 = vunpack.c.h.b16 %v242
        %v541 = vunpack.c.l.b16 %v243
        %v542 = vunpack.c.h.b16 %v243
        %v543 = vunpack.c.l.b16 %v244
        %v544 = vunpack.c.h.b16 %v244
        %v545 = vunpack.c.l.b16 %v245
        %v546 = vunpack.c.h.b16 %v245
        %v547 = vunpack.c.l.b16 %v246
        %v548 = vunpack.c.h.b16 %v246
        %v549 = vunpack.c.l.b16 %v247
        %v550 = vunpack.c.h.b16 %v247
        %v551 = vunpack.c.l.b16 %v248
        %v552 = vunpack.c.h.b16 %v248
        %v553 = vunpack.c.l.b16 %v249
        %v554 = vunpack.c.h.b16 %v249
        %v555 = vunpack.c.l.b16 %v250
        %v556 = vunpack.c.h.b16 %v250
        %v557 = vunpack.c.l.b16 %v251
        %v558 = vunpack.c.h.b16 %v251
        %v559 = vunpack.c.l.b16 %v252
        %v560 = vunpack.c.h.b16 %v252
        %v561 = vunpack.c.l.b16 %v253
        %v562 = vunpack.c.h.b16 %v253
        %v563 = vunpack.c.l.b16 %v254
        %v564 = vunpack.c.h.b16 %v254
        %v565 = vunpack.c.l.b16 %v255
        %v566 = vunpack.c.h.b16 %v255
        %v567 = vunpack.c.l.b16 %v256
        %v568 = vunpack.c.h.b16 %v256
        %v569 = vunpack.c.l.b16 %v257
        %v570 = vunpack.c.h.b16 %v257
        %v571 = vunpack.c.l.b16 %v258
        %v572 = vunpack.c.h.b16 %v258
        %v573 = vunpack.c.l.b16 %v259
        %v574 = vunpack.c.h.b16 %v259
        %v575 = vunpack.c.l.b16 %v260
        %v576 = vunpack.c.h.b16 %v260
        %v577 = vunpack.c.l.b16 %v261
        %v578 = vunpack.c.h.b16 %v261
        %v579 = vunpack.c.l.b16 %v262
        %v580 = vunpack.c.h.b16 %v262
        %v581 = vunpack.c.l.b16 %v263
        %v582 = vunpack.c.h.b16 %v263
        %v583 = vunpack.c.l.b16 %v264
        %v584 = vunpack.c.h.b16 %v264
        %v585 = vunpack.c.l.b16 %v265
        %v586 = vunpack.c.h.b16 %v265
        %v587 = vunpack.c.l.b16 %v266
        %v588 = vunpack.c.h.b16 %v266
        %v589 = vunpack.c.l.b16 %v267
        %v590 = vunpack.c.h.b16 %v267
        %v591 = vunpack.c.l.b16 %v268
        %v592 = vunpack.c.h.b16 %v268
        %v593 = vunpack.c.l.b16 %v269
        %v594 = vunpack.c.h.b16 %v269
        %v595 = vunpack.c.l.b16 %v270
        %v596 = vunpack.c.h.b16 %v270
        %v597 = vunpack.c.l.b16 %v271
        %v598 = vunpack.c.h.b16 %v271
        %v599 = vunpack.c.l.b16 %v272
        %v600 = vunpack.c.h.b16 %v272
        %v601 = vunpack.c.l.b16 %v273
        %v602 = vunpack.c.h.b16 %v273
        %v603 = vunpack.c.l.b16 %v274
        %v604 = vunpack.c.h.b16 %v274
        %v605 = vunpack.c.l.b16 %v275
        %v606 = vunpack.c.h.b16 %v275
        %v607 = vunpack.c.l.b16 %v276
        %v608 = vunpack.c.h.b16 %v276
        %v609 = vunpack.c.l.b16 %v277
        %v610 = vunpack.c.h.b16 %v277
        %v611 = vunpack.c.l.b16 %v278
        %v612 = vunpack.c.h.b16 %v278
        %v613 = vunpack.c.l.b16 %v279
        %v614 = vunpack.c.h.b16 %v279
        %v615 = vunpack.c.l.b16 %v280
        %v616 = vunpack.c.h.b16 %v280
        %v617 = vunpack.c.l.b16 %v281
        %v618 = vunpack.c.h.b16 %v281
        %v619 = vunpack.c.l.b16 %v282
        %v620 = vunpack.c.h.b16 %v282
        %v621 = vunpack.c.l.b16 %v283
        %v622 = vunpack.c.h.b16 %v283
        %v623 = vunpack.c.l.b16 %v284
        %v624 = vunpack.c.h.b16 %v284
        %v625 = vunpack.c.l.b16 %v285
        %v626 = vunpack.c.h.b16 %v285
        %v627 = vunpack.c.l.b16 %v286
        %v628 = vunpack.c.h.b16 %v286
        %v629 = vunpack.c.l.b16 %v287
        %v630 = vunpack.c.h.b16 %v287
        %v631 = vunpack.c.l.b16 %v288
        %v632 = vunpack.c.h.b16 %v288
        %v633 = vunpack.c.l.b16 %v289
        %v634 = vunpack.c.h.b16 %v289
        %v635 = vunpack.c.l.b16 %v290
        %v636 = vunpack.c.h.b16 %v290
        %v637 = vunpack.c.l.b16 %v291
        %v638 = vunpack.c.h.b16 %v291
        %v639 = vunpack.c.l.b16 %v292
        %v640 = vunpack.c.h.b16 %v292
        %v641 = vunpack.c.l.b16 %v293
        %v642 = vunpack.c.h.b16 %v293
        %v643 = vunpack.c.l.b16 %v294
        %v644 = vunpack.c.h.b16 %v294
        %v645 = vunpack.c.l.b16 %v295
        %v646 = vunpack.c.h.b16 %v295
        %v647 = vunpack.c.l.b16 %v296
        %v648 = vunpack.c.h.b16 %v296
        %v649 = vunpack.c.l.b16 %v297
        %v650 = vunpack.c.h.b16 %v297
        %v651 = vunpack.c.l.b16 %v298
        %v652 = vunpack.c.h.b16 %v298
        %v653 = vunpack.c.l.b16 %v299
        %v654 = vunpack.c.h.b16 %v299
        %v655 = vunpack.c.l.b16 %v300
        %v656 = vunpack.c.h.b16 %v300
        %v657 = vunpack.c.l.b16 %v301
        %v658 = vunpack.c.h.b16 %v301
        %v659 = vunpack.c.l.b16 %v302
        %v660 = vunpack.c.h.b16 %v302
        %v661 = vunpack.c.l.b16 %v303
        %v662 = vunpack.c.h.b16 %v303
        %v663 = vunpack.c.l.b16 %v304
        %v664 = vunpack.c.h.b16 %v304
        %v665 = vunpack.c.l.b16 %v305
        %v666 = vunpack.c.h.b16 %v305
        %v667 = vunpack.c.l.b16 %v306
        %v668 = vunpack.c.h.b16 %v306
        %v669 = vunpack.c.l.b16 %v307
        %v670 = vunpack.c.h.b16 %v307
        %v671 = vunpack.c.l.b16 %v308
        %v672 = vunpack.c.h.b16 %v308
        %v673 = vunpack.c.l.b16 %v309
        %v674 = vunpack.c.h.b16 %v309
        %v675 = vunpack.c.l.b16 %v310
        %v676 = vunpack.c.h.b16 %v310
        %v677 = vunpack.c.l.b16 %v311
        %v678 = vunpack.c.h.b16 %v311
        %v679 = vunpack.c.l.b16 %v312
        %v680 = vunpack.c.h.b16 %v312
        %v681 = vunpack.c.l.b16 %v313
        %v682 = vunpack.c.h.b16 %v313
        %v683 = vunpack.c.l.b16 %v314
        %v684 = vunpack.c.h.b16 %v314
        %v685 = vunpack.c.l.b16 %v315
        %v686 = vunpack.c.h.b16 %v315
        %v687 = vunpack.c.l.b16 %v316
        %v688 = vunpack.c.h.b16 %v316
        %v689 = vunpack.c.l.b16 %v317
        %v690 = vunpack.c.h.b16 %v317
        %v691 = vunpack.c.l.b16 %v318
        %v692 = vunpack.c.h.b16 %v318
        %v693 = vunpack.c.l.b16 %v319
        %v694 = vunpack.c.h.b16 %v319
        %v695 = vunpack.c.l.b16 %v320
        %v696 = vunpack.c.h.b16 %v320
        %v697 = vunpack.c.l.b16 %v321
        %v698 = vunpack.c.h.b16 %v321
        %v699 = vunpack.c.l.b16 %v322
        %v700 = vunpack.c.h.b16 %v322
        %v701 = vunpack.c.l.b16 %v323
        %v702 = vunpack.c.h.b16 %v323
        %v703 = vunpack.c.l.b16 %v324
        %v704 = vunpack.c.h.b16 %v324
        %v705 = vunpack.c.l.b16 %v325
        %v706 = vunpack.c.h.b16 %v325
        %v707 = vunpack.c.l.b16 %v326
        %v708 = vunpack.c.h.b16 %v326
        %v709 = vunpack.c.l.b16 %v327
        %v710 = vunpack.c.h.b16 %v327
        %v711 = vunpack.c.l.b16 %v328
        %v712 = vunpack.c.h.b16 %v328
        %v713 = vpack.c.b16 %v461, %v457
        %v714 = vpack.c.b16 %v462, %v458
        %v715 = vpack.c.b16 %v463, %v459
        %v716 = vpack.c.b16 %v464, %v460
        %v717 = vpack.c.b16 %v469, %v465
        %v718 = vpack.c.b16 %v470, %v466
        %v719 = vpack.c.b16 %v471, %v467
        %v720 = vpack.c.b16 %v472, %v468
        %v721 = vpack.c.b16 %v477, %v473
        %v722 = vpack.c.b16 %v478, %v474
        %v723 = vpack.c.b16 %v479, %v475
        %v724 = vpack.c.b16 %v480, %v476
        %v725 = vpack.c.b16 %v485, %v481
        %v726 = vpack.c.b16 %v486, %v482
        %v727 = vpack.c.b16 %v487, %v483
        %v728 = vpack.c.b16 %v488, %v484
        %v729 = vpack.c.b16 %v493, %v489
        %v730 = vpack.c.b16 %v494, %v490
        %v731 = vpack.c.b16 %v495, %v491
        %v732 = vpack.c.b16 %v496, %v492
        %v733 = vpack.c.b16 %v501, %v497
        %v734 = vpack.c.b16 %v502, %v498
        %v735 = vpack.c.b16 %v503, %v499
        %v736 = vpack.c.b16 %v504, %v500
        %v737 = vpack.c.b16 %v509, %v505
        %v738 = vpack.c.b16 %v510, %v506
        %v739 = vpack.c.b16 %v511, %v507
        %v740 = vpack.c.b16 %v512, %v508
        %v741 = vpack.c.b16 %v517, %v513
        %v742 = vpack.c.b16 %v518, %v514
        %v743 = vpack.c.b16 %v519, %v515
        %v744 = vpack.c.b16 %v520, %v516
        %v745 = vpack.c.b16 %v525, %v521
        %v746 = vpack.c.b16 %v526, %v522
        %v747 = vpack.c.b16 %v527, %v523
        %v748 = vpack.c.b16 %v528, %v524
        %v749 = vpack.c.b16 %v533, %v529
        %v750 = vpack.c.b16 %v534, %v530
        %v751 = vpack.c.b16 %v535, %v531
        %v752 = vpack.c.b16 %v536, %v532
        %v753 = vpack.c.b16 %v541, %v537
        %v754 = vpack.c.b16 %v542, %v538
        %v755 = vpack.c.b16 %v543, %v539
        %v756 = vpack.c.b16 %v544, %v540
        %v757 = vpack.c.b16 %v549, %v545
        %v758 = vpack.c.b16 %v550, %v546
        %v759 = vpack.c.b16 %v551, %v547
        %v760 = vpack.c.b16 %v552, %v548
        %v761 = vpack.c.b16 %v557, %v553
        %v762 = vpack.c.b16 %v558, %v554
        %v763 = vpack.c.b16 %v559, %v555
        %v764 = vpack.c.b16 %v560, %v556
        %v765 = vpack.c.b16 %v565, %v561
        %v766 = vpack.c.b16 %v566, %v562
        %v767 = vpack.c.b16 %v567, %v563
        %v768 = vpack.c.b16 %v568, %v564
        %v769 = vpack.c.b16 %v573, %v569
        %v770 = vpack.c.b16 %v574, %v570
        %v771 = vpack.c.b16 %v575, %v571
        %v772 = vpack.c.b16 %v576, %v572
        %v773 = vpack.c.b16 %v581, %v577
        %v774 = vpack.c.b16 %v582, %v578
        %v775 = vpack.c.b16 %v583, %v579
        %v776 = vpack.c.b16 %v584, %v580
        %v777 = vpack.c.b16 %v589, %v585
        %v778 = vpack.c.b16 %v590, %v586
        %v779 = vpack.c.b16 %v591, %v587
        %v780 = vpack.c.b16 %v592, %v588
        %v781 = vpack.c.b16 %v597, %v593
        %v782 = vpack.c.b16 %v598, %v594
        %v783 = vpack.c.b16 %v599, %v595
        %v784 = vpack.c.b16 %v600, %v596
        %v785 = vpack.c.b16 %v605, %v601
        %v786 = vpack.c.b16 %v606, %v602
        %v787 = vpack.c.b16 %v607, %v603
        %v788 = vpack.c.b16 %v608, %v604
        %v789 = vpack.c.b16 %v613, %v609
        %v790 = vpack.c.b16 %v614, %v610
        %v791 = vpack.c.b16 %v615, %v611
        %v792 = vpack.c.b16 %v616, %v612
        %v793 = vpack.c.b16 %v621, %v617
        %v794 = vpack.c.b16 %v622, %v618
        %v795 = vpack.c.b16 %v623, %v619
        %v796 = vpack.c.b16 %v624, %v620
        %v797 = vpack.c.b16 %v629, %v625
        %v798 = vpack.c.b16 %v630, %v626
        %v799 = vpack.c.b16 %v631, %v627
        %v800 = vpack.c.b16 %v632, %v628
        %v801 = vpack.c.b16 %v637, %v633
        %v802 = vpack.c.b16 %v638, %v634
        %v803 = vpack.c.b16 %v639, %v635
        %v804 = vpack.c.b16 %v640, %v636
        %v805 = vpack.c.b16 %v645, %v641
        %v806 = vpack.c.b16 %v646, %v642
        %v807 = vpack.c.b16 %v647, %v643
        %v808 = vpack.c.b16 %v648, %v644
        %v809 = vpack.c.b16 %v653, %v649
        %v810 = vpack.c.b16 %v654, %v650
        %v811 = vpack.c.b16 %v655, %v651
        %v812 = vpack.c.b16 %v656, %v652
        %v813 = vpack.c.b16 %v661, %v657
        %v814 = vpack.c.b16 %v662, %v658
        %v815 = vpack.c.b16 %v663, %v659
        %v816 = vpack.c.b16 %v664, %v660
        %v817 = vpack.c.b16 %v669, %v665
        %v818 = vpack.c.b16 %v670, %v666
        %v819 = vpack.c.b16 %v671, %v667
        %v820 = vpack.c.b16 %v672, %v668
        %v821 = vpack.c.b16 %v677, %v673
        %v822 = vpack.c.b16 %v678, %v674
        %v823 = vpack.c.b16 %v679, %v675
        %v824 = vpack.c.b16 %v680, %v676
        %v825 = vpack.c.b16 %v685, %v681
        %v826 = vpack.c.b16 %v686, %v682
        %v827 = vpack.c.b16 %v687, %v683
        %v828 = vpack.c.b16 %v688, %v684
        %v829 = vpack.c.b16 %v693, %v689
        %v830 = vpack.c.b16 %v694, %v690
        %v831 = vpack.c.b16 %v695, %v691
        %v832 = vpack.c.b16 %v696, %v692
        %v833 = vpack.c.b16 %v701, %v697
        %v834 = vpack.c.b16 %v702, %v698
        %v835 = vpack.c.b16 %v703, %v699
        %v836 = vpack.c.b16 %v704, %v700
        %v837 = vpack.c.b16 %v709, %v705
        %v838 = vpack.c.b16 %v710, %v706
        %v839 = vpack.c.b16 %v711, %v707
        %v840 = vpack.c.b16 %v712, %v708
        %969 = vmatprep.subr.bf16.mxu0 %v742
        %970 = vmatpush1.bf16.msra.mxu0 %v741
        %971 = vmatprep.subr.bf16.mxu0 %v738
        %972 = vmatpush1.bf16.msra.mxu0 %v737
        %973 = vmatprep.subr.bf16.mxu0 %v734
        %974 = vmatpush1.bf16.msra.mxu0 %v733
        %975 = vmatprep.subr.bf16.mxu0 %v730
        %976 = vmatpush1.bf16.msra.mxu0 %v729
        %977 = vmatprep.subr.bf16.mxu0 %v726
        %978 = vmatpush1.bf16.msra.mxu0 %v725
        %979 = vmatprep.subr.bf16.mxu0 %v722
        %980 = vmatpush1.bf16.msra.mxu0 %v721
        %981 = vmatprep.subr.bf16.mxu0 %v718
        %982 = vmatpush1.bf16.msra.mxu0 %v717
        %983 = vmatprep.subr.bf16.mxu0 %v714
        %984 = vmatpush1.bf16.msra.mxu0 %v713
        %985 = vmatprep.subr.bf16.mxu0 %v774
        %986 = vmatpush2.bf16.msra.mxu0 %v773
        %987 = vmatprep.subr.bf16.mxu0 %v770
        %988 = vmatpush2.bf16.msra.mxu0 %v769
        %989 = vmatprep.subr.bf16.mxu0 %v766
        %990 = vmatpush2.bf16.msra.mxu0 %v765
        %991 = vmatprep.subr.bf16.mxu0 %v762
        %992 = vmatpush2.bf16.msra.mxu0 %v761
        %993 = vmatprep.subr.bf16.mxu0 %v758
        %994 = vmatpush2.bf16.msra.mxu0 %v757
        %995 = vmatprep.subr.bf16.mxu0 %v754
        %996 = vmatpush2.bf16.msra.mxu0 %v753
        %997 = vmatprep.subr.bf16.mxu0 %v750
        %998 = vmatpush2.bf16.msra.mxu0 %v749
        %999 = vmatprep.subr.bf16.mxu0 %v746
        %1000 = vmatpush2.bf16.msra.mxu0 %v745
        %1001 = vmatprep.mubr.bf16.mxu0 %v198
        %1002 = vmatmul.mubr.bf16.gmra.mxu0 %v197
        %v1003 = vpop.f32.mrf.mxu0
        %v1004 = vadd.f32 0.0, %v1003
        %v1005 = vpop.f32.mrf.mxu0
        %v1006 = vadd.f32 0.0, %v1005
        %v1007 = vpop.f32.mrf.mxu0
        %v1008 = vpop.f32.mrf.mxu0
        %1009 = vdwg.mxu0
        %1010 = vmatprep.subr.bf16.mxu0 %v806
        %1011 = vmatpush1.bf16.msra.mxu0 %v805
        %1012 = vmatprep.subr.bf16.mxu0 %v802
        %1013 = vmatpush1.bf16.msra.mxu0 %v801
        %1014 = vmatprep.subr.bf16.mxu0 %v798
        %1015 = vmatpush1.bf16.msra.mxu0 %v797
        %1016 = vmatprep.subr.bf16.mxu0 %v794
        %1017 = vmatpush1.bf16.msra.mxu0 %v793
        %1018 = vmatprep.subr.bf16.mxu0 %v790
        %1019 = vmatpush1.bf16.msra.mxu0 %v789
        %1020 = vmatprep.subr.bf16.mxu0 %v786
        %1021 = vmatpush1.bf16.msra.mxu0 %v785
        %1022 = vmatprep.subr.bf16.mxu0 %v782
        %1023 = vmatpush1.bf16.msra.mxu0 %v781
        %1024 = vmatprep.subr.bf16.mxu0 %v778
        %1025 = vmatpush1.bf16.msra.mxu0 %v777
        %1026 = vmatprep.subr.bf16.mxu0 %v838
        %1027 = vmatpush2.bf16.msra.mxu0 %v837
        %1028 = vmatprep.subr.bf16.mxu0 %v834
        %1029 = vmatpush2.bf16.msra.mxu0 %v833
        %1030 = vmatprep.subr.bf16.mxu0 %v830
        %1031 = vmatpush2.bf16.msra.mxu0 %v829
        %1032 = vmatprep.subr.bf16.mxu0 %v826
        %1033 = vmatpush2.bf16.msra.mxu0 %v825
        %1034 = vmatprep.subr.bf16.mxu0 %v822
        %1035 = vmatpush2.bf16.msra.mxu0 %v821
        %1036 = vmatprep.subr.bf16.mxu0 %v818
        %1037 = vmatpush2.bf16.msra.mxu0 %v817
        %1038 = vmatprep.subr.bf16.mxu0 %v814
        %1039 = vmatpush2.bf16.msra.mxu0 %v813
        %1040 = vmatprep.subr.bf16.mxu0 %v810
        %1041 = vmatpush2.bf16.msra.mxu0 %v809
        %1042 = vmatprep.mubr.bf16.mxu0 %v200
        %1043 = vmatmul.mubr.bf16.gmra.mxu0 %v199
        %v1044 = vpop.f32.mrf.mxu0
        %v1045 = vadd.f32 %v1004, %v1044
        %v1046 = vpop.f32.mrf.mxu0
        %v1047 = vadd.f32 %v1006, %v1046
        %v1048 = vpop.f32.mrf.mxu0
        %v1049 = vpop.f32.mrf.mxu0
        %1050 = vdwg.mxu0
        %1051 = vmatprep.subr.bf16.mxu0 %v744
        %1052 = vmatpush1.bf16.msra.mxu0 %v743
        %1053 = vmatprep.subr.bf16.mxu0 %v740
        %1054 = vmatpush1.bf16.msra.mxu0 %v739
        %1055 = vmatprep.subr.bf16.mxu0 %v736
        %1056 = vmatpush1.bf16.msra.mxu0 %v735
        %1057 = vmatprep.subr.bf16.mxu0 %v732
        %1058 = vmatpush1.bf16.msra.mxu0 %v731
        %1059 = vmatprep.subr.bf16.mxu0 %v728
        %1060 = vmatpush1.bf16.msra.mxu0 %v727
        %1061 = vmatprep.subr.bf16.mxu0 %v724
        %1062 = vmatpush1.bf16.msra.mxu0 %v723
        %1063 = vmatprep.subr.bf16.mxu0 %v720
        %1064 = vmatpush1.bf16.msra.mxu0 %v719
        %1065 = vmatprep.subr.bf16.mxu0 %v716
        %1066 = vmatpush1.bf16.msra.mxu0 %v715
        %1067 = vmatprep.subr.bf16.mxu0 %v776
        %1068 = vmatpush2.bf16.msra.mxu0 %v775
        %1069 = vmatprep.subr.bf16.mxu0 %v772
        %1070 = vmatpush2.bf16.msra.mxu0 %v771
        %1071 = vmatprep.subr.bf16.mxu0 %v768
        %1072 = vmatpush2.bf16.msra.mxu0 %v767
        %1073 = vmatprep.subr.bf16.mxu0 %v764
        %1074 = vmatpush2.bf16.msra.mxu0 %v763
        %1075 = vmatprep.subr.bf16.mxu0 %v760
        %1076 = vmatpush2.bf16.msra.mxu0 %v759
        %1077 = vmatprep.subr.bf16.mxu0 %v756
        %1078 = vmatpush2.bf16.msra.mxu0 %v755
        %1079 = vmatprep.subr.bf16.mxu0 %v752
        %1080 = vmatpush2.bf16.msra.mxu0 %v751
        %1081 = vmatprep.subr.bf16.mxu0 %v748
        %1082 = vmatpush2.bf16.msra.mxu0 %v747
        %1083 = vmatprep.mubr.bf16.mxu0 %v198
        %1084 = vmatmul.mubr.bf16.gmra.mxu0 %v197
        %v1085 = vpop.f32.mrf.mxu0
        %v1086 = vadd.f32 0.0, %v1085
        %v1087 = vpop.f32.mrf.mxu0
        %v1088 = vadd.f32 0.0, %v1087
        %v1089 = vpop.f32.mrf.mxu0
        %v1090 = vpop.f32.mrf.mxu0
        %1091 = vdwg.mxu0
        %1092 = vmatprep.subr.bf16.mxu0 %v808
        %1093 = vmatpush1.bf16.msra.mxu0 %v807
        %1094 = vmatprep.subr.bf16.mxu0 %v804
        %1095 = vmatpush1.bf16.msra.mxu0 %v803
        %1096 = vmatprep.subr.bf16.mxu0 %v800
        %1097 = vmatpush1.bf16.msra.mxu0 %v799
        %1098 = vmatprep.subr.bf16.mxu0 %v796
        %1099 = vmatpush1.bf16.msra.mxu0 %v795
        %1100 = vmatprep.subr.bf16.mxu0 %v792
        %1101 = vmatpush1.bf16.msra.mxu0 %v791
        %1102 = vmatprep.subr.bf16.mxu0 %v788
        %1103 = vmatpush1.bf16.msra.mxu0 %v787
        %1104 = vmatprep.subr.bf16.mxu0 %v784
        %1105 = vmatpush1.bf16.msra.mxu0 %v783
        %1106 = vmatprep.subr.bf16.mxu0 %v780
        %1107 = vmatpush1.bf16.msra.mxu0 %v779
        %1108 = vmatprep.subr.bf16.mxu0 %v840
        %1109 = vmatpush2.bf16.msra.mxu0 %v839
        %1110 = vmatprep.subr.bf16.mxu0 %v836
        %1111 = vmatpush2.bf16.msra.mxu0 %v835
        %1112 = vmatprep.subr.bf16.mxu0 %v832
        %1113 = vmatpush2.bf16.msra.mxu0 %v831
        %1114 = vmatprep.subr.bf16.mxu0 %v828
        %1115 = vmatpush2.bf16.msra.mxu0 %v827
        %1116 = vmatprep.subr.bf16.mxu0 %v824
        %1117 = vmatpush2.bf16.msra.mxu0 %v823
        %1118 = vmatprep.subr.bf16.mxu0 %v820
        %1119 = vmatpush2.bf16.msra.mxu0 %v819
        %1120 = vmatprep.subr.bf16.mxu0 %v816
        %1121 = vmatpush2.bf16.msra.mxu0 %v815
        %1122 = vmatprep.subr.bf16.mxu0 %v812
        %1123 = vmatpush2.bf16.msra.mxu0 %v811
        %1124 = vmatprep.mubr.bf16.mxu0 %v200
        %1125 = vmatmul.mubr.bf16.gmra.mxu0 %v199
        %v1126 = vpop.f32.mrf.mxu0
        %v1127 = vadd.f32 %v1086, %v1126
        %v1128 = vpop.f32.mrf.mxu0
        %v1129 = vadd.f32 %v1088, %v1128
        %v1130 = vpop.f32.mrf.mxu0
        %v1131 = vpop.f32.mrf.mxu0
        %1132 = vdwg.mxu0
        %v1133 = vmul.f32 %v1045, %v1045
        %v1134 = vmul.f32 %v1047, %v1047
        %v1135 = vmul.f32 %v1127, %v1127
        %v1136 = vmul.f32 %v1129, %v1129
        %v1137 = vadd.f32 %v1133, %v1135
        %v1138 = vadd.f32 %v1134, %v1136
        %v1139 = vmax.f32 %v1137, 1.1920929e-07
        %v1140 = vmax.f32 %v1138, 1.1920929e-07
        %v1141 = vlog2.pop %v1139
        %v1142 = vmul.f32 %v1141, 0.6931472
        %v1143 = vlog2.pop %v1140
        %v1144 = vmul.f32 %v1143, 0.6931472
        %1145 = vrot.lane.b32.xlu0 %v1142, 1
        %v1146 = vpop.permute.xlu0 %1145
        %1147 = vrot.lane.b32.xlu0 %v1144, 1
        %v1148 = vpop.permute.xlu0 %1147
        %1149 = vrot.lane.b32.xlu0 0.0, 1
        %v1150 = vpop.permute.xlu0 %1149
        %vm1151 = vcmp.lt.s32.totalorder %v162, 1
        %v1152 = vsel %vm1151, %v1148, %v1150
        %v1153 = vsel %vm1151, %v1146, %v1148
        %v1154 = vsel %vm1151, %v1150, %v1146
        %vm1155 = vcmp.eq.s32.totalorder %v162, 0
        %vm1156 = vcmp.eq.s32.totalorder %v163, 0
        %vm1157 = vcmp.eq.s32.totalorder %v164, 0
        %v1158 = vsel %vm1155, %v196, %v1154
        %v1159 = vsel %vm1156, %v196, %v1153
        %v1160 = vsel %vm1157, %v196, %v1152
        %1161 = vst [vmem:[%s151] sm:$0xff] %v1158
        %1162 = vst [vmem:[%s151 + $0x8] sm:$0xff] %v1159
        %1163 = vst [vmem:[%s151 + $0x10] sm:$0xff] %v1160
        %s1164 = sand.u32 %s72, 1
        %s1165 = scalar_lea.sflag [#allocation4], %s1164
        %s1166 = sand.u32 %s72, 1
        %s1167 = smul.addr %s1166, 24
        %s1168 = scalar_lea.vmem [#allocation5], %s1167
        // Predicated region
        $region33: #{extract_audio_feature.1} parent=27 // pred_check
          %p1169 = pneg %p82
        $region34: #{extract_audio_feature.1} parent=27 // pred_check_branch
          %1171 = sbr.rel (%p1169) target = $region36
        $region35: #{extract_audio_feature.1} parent=27 // pred_region
          %s1173 = ssub.s32 384, 384
          %1174 = vsyncadd %s1165, %s1173
          %s1175 = smul.addr %s17, 3
          %s1176 = smul.addr %s1175, 128
          %s1177 = scalar_lea.hbm %s2, %s1176
          %s1179 = sshll.u32 %s1168, 4
          %s1180 = int_to_ptr.vmem [resolvable:$true] %s1179
          %1182 = dma.vmem_to_hbm [thread:$0]  %s1180, 384, %s1177, %s1165
        $region36: #{extract_audio_feature.1} parent=27 // pred_fallthru
          _
      $region28: #{extract_audio_feature.1} parent=5 // pred_fallthru
        _
      %p1183 = scmp.le.s32.totalorder 2, %s12
      // Predicated region
      $region37: #{extract_audio_feature.1} parent=5 // pred_check
        %p1184 = pneg %p1183
      $region38: #{extract_audio_feature.1} parent=5 // pred_check_branch
        %1186 = sbr.rel (%p1184) target = $region40
      $region39: #{extract_audio_feature.1} parent=5 // pred_region
        %s1187 = ssub.s32 %s12, 2
        // Predicated region
        $region41: #{extract_audio_feature.1} parent=39 // pred_check
          %p1188 = pneg %p88
        $region42: #{extract_audio_feature.1} parent=39 // pred_check_branch
          %1190 = sbr.rel (%p1188) target = $region44
        $region43: #{extract_audio_feature.1} parent=39 // pred_region
          %s1191 = sand.u32 %s73, 1
          %s1192 = scalar_lea.sflag [#allocation4], %s1191
          %s1193 = sand.u32 %s73, 1
          %s1194 = smul.addr %s1193, 24
          %s1195 = scalar_lea.vmem [#allocation5], %s1194
          %1196 = dma.done %s1192, 384
        $region44: #{extract_audio_feature.1} parent=39 // pred_fallthru
          _
      $region40: #{extract_audio_feature.1} parent=5 // pred_fallthru
        _
    $region6: #{extract_audio_feature.1} parent=1 // loop_footer
      %s16 = sadd.s32 1, %s12
    $region7: #{extract_audio_feature.1} parent=1 // loop_footer_branch
      %11 = sbr.rel target = $region3
    $region8: #{extract_audio_feature.1} parent=1 // loop_exit
      _
    %1197 = vsyncpa [#allocation3], 1
    %s1198 = scalar_lea.sflag [#allocation3], 1
    %1199 = vsyncpa %s1198, 1
    %1200 = vsyncpa [#allocation4], 1
    %s1201 = scalar_lea.sflag [#allocation4], 1
    %1202 = vsyncpa %s1201, 1

</llo_original>
